<compile_context>
chip_gen: v5e
topology: v5e:2x2
jax: 0.10.0
libtpu: 0.0.40
codegen_flags: <defaults>
</compile_context>

<pallas_src>
import functools
import math

import jax
import jax.numpy as jnp
from jax.experimental import pallas as pl
from jax.experimental.pallas import tpu as pltpu

# Cityscapes class weights hard-coded in OhemCrossEntropy2d.__init__ (C = 19).
CITYSCAPES_WEIGHT = [
    0.8373, 0.9180, 0.8660, 1.0345, 1.0166, 0.9969, 0.9754, 1.0489, 0.8786,
    1.0023, 0.9539, 0.9843, 1.1116, 0.9037, 1.0865, 1.0955, 1.0865, 1.1529,
    1.0507,
]

# Pixels per grid step (multiple of 128).  A (19, 32768) f32 tile plus the
# target / output streams is ~13 MiB live with double buffering -- safe on
# v5e/v6e (128 MiB VMEM) and v7x (64 MiB) while amortizing the ~0.35 us/step
# grid overhead.
TILE_N = 32768


# ---------------------------------------------------------------------------
# Kernel 1: per-pixel -log_softmax at the target class + class-weight lookup
# + validity masking.  Logits stay in native (n, c, h*w) layout: C=19 classes
# on sublanes, pixels on lanes.  Outputs are two lane-dense (1, T) streams:
#   nll_v = nll * valid      (0 for invalid / padded pixels  <=>  prob = 1)
#   w_v   = weight * valid   (0 for invalid / padded pixels)
# ---------------------------------------------------------------------------
def _per_pixel_kernel(pred_ref, tgt_ref, aux_ref, nll_ref, w_ref, *,
                      ignore_index):
    logits = pred_ref[...].astype(jnp.float32)            # (C, T)
    tgt = tgt_ref[...]                                     # (1, T) int32
    valid = tgt != ignore_index                            # (1, T) bool
    tgt0 = jnp.where(valid, tgt, 0)                        # target * valid_mask

    class_ids = jax.lax.broadcasted_iota(jnp.int32, logits.shape, 0)
    onehot = (class_ids == tgt0).astype(jnp.float32)       # (C, T)

    # numerically-stable log-softmax statistics over the class (sublane) axis
    m = jnp.max(logits, axis=0, keepdims=True)             # (1, T)   XLU
    e = jnp.exp(logits - m)                                 # (C, T)   EUP

    aux = aux_ref[...]                                      # (2, C): [ones; w]
    # Class-axis sums on the otherwise-idle MXU (frees XLU/VALU slots, which
    # are the saturating units on v6e/v7x for this memory-streaming kernel).
    z = jnp.dot(aux[0:1, :], e, preferred_element_type=jnp.float32)        # (1, T)
    w_t = jnp.dot(aux[1:2, :], onehot, preferred_element_type=jnp.float32)  # (1, T)

    logit_t = jnp.sum(logits * onehot, axis=0, keepdims=True)   # logits[target]
    nll = (jnp.log(z) + m) - logit_t                            # -log_softmax[target]

    vf = valid.astype(jnp.float32)
    nll_ref[...] = nll * vf
    w_ref[...] = w_t * vf


# ---------------------------------------------------------------------------
# Kernel 2: final weighted reduction.  The OHEM keep-mask is recomputed
# in-kernel from nll and the SMEM threshold scalar (keep iff nll >= thr_nll,
# the nll-space image of prob <= threshold).  Accumulates numerator /
# denominator across the whole grid.
# ---------------------------------------------------------------------------
def _reduce_kernel(thr_ref, nll_ref, w_ref, out_ref):
    @pl.when(jnp.logical_and(pl.program_id(0) == 0, pl.program_id(1) == 0))
    def _():
        out_ref[0, 0] = 0.0
        out_ref[0, 1] = 0.0

    thr = thr_ref[0]                                       # SMEM scalar
    nll = nll_ref[...]                                     # (1, T)
    w = w_ref[...]                                         # (1, T)
    kept = (nll >= thr).astype(jnp.float32)                # OHEM keep mask
    out_ref[0, 0] += jnp.sum(w * nll * kept)               # sum(w_t * nll)
    out_ref[0, 1] += jnp.sum(w * kept)                     # sum(w_t)


# ---------------------------------------------------------------------------
# OhemCrossEntropy2d.forward
# ---------------------------------------------------------------------------
def ohem_cross_entropy_2d(pred, target, class_weight, *, ignore_index=-1,
                          thresh=0.7, min_kept=100000, tile_n=TILE_N):
    n, c, h, w = pred.shape
    assert c == len(class_weight)
    hw = h * w
    N = n * hw

    # Free reshapes only: keep native (n, c, hw) layout and native dtype.
    pred3 = pred.reshape(n, c, hw)
    tgt3 = target.reshape(n, 1, hw).astype(jnp.int32)

    tile = min(tile_n, pl.cdiv(hw, 128) * 128)
    hw_pad = pl.cdiv(hw, tile) * tile
    if hw_pad != hw:
        pred3 = jnp.pad(pred3, ((0, 0), (0, 0), (0, hw_pad - hw)))
        tgt3 = jnp.pad(tgt3, ((0, 0), (0, 0), (0, hw_pad - hw)),
                       constant_values=ignore_index)

    grid = (n, hw_pad // tile)

    # Ones row + class weights, passed as a (2, C) VMEM input (kernels may not
    # capture array constants -- this was the previous compile failure).
    aux = jnp.stack([jnp.ones((c,), jnp.float32),
                     jnp.asarray(class_weight, dtype=jnp.float32)])

    nll_out, w_out = pl.pallas_call(
        functools.partial(_per_pixel_kernel, ignore_index=ignore_index),
        out_shape=[jax.ShapeDtypeStruct((n, 1, hw_pad), jnp.float32),
                   jax.ShapeDtypeStruct((n, 1, hw_pad), jnp.float32)],
        grid_spec=pltpu.PrefetchScalarGridSpec(
            num_scalar_prefetch=0,
            grid=grid,
            in_specs=[
                pl.BlockSpec((None, c, tile), lambda b, i: (b, 0, i)),
                pl.BlockSpec((None, 1, tile), lambda b, i: (b, 0, i)),
                pl.BlockSpec((2, c), lambda b, i: (0, 0)),
            ],
            out_specs=[
                pl.BlockSpec((None, 1, tile), lambda b, i: (b, 0, i)),
                pl.BlockSpec((None, 1, tile), lambda b, i: (b, 0, i)),
            ],
        ),
        compiler_params=pltpu.CompilerParams(
            dimension_semantics=("parallel", "parallel"),   # megacore on v7x
            vmem_limit_bytes=48 * 1024 * 1024),
    )(pred3, tgt3, aux)

    # ---- OHEM threshold selection in JAX glue (nll space) -------------------
    # prob = exp(-nll) is monotone, so: k-th smallest prob  <->  k-th largest
    # nll, and  prob <= thr  <->  nll >= -log(thr).  Invalid/padded pixels
    # carry nll = 0 (== prob 1) and weight 0 and cannot perturb the selection.
    # TODO(synk): the data-dependent `print('Lables: ...')` side effect is omitted.
    nll_flat = nll_out.reshape(-1)                       # (n * hw_pad,)
    w_flat = w_out.reshape(-1)

    neg_log_thresh = float(-math.log(float(thresh)))
    num_valid = jnp.sum((w_flat > 0).astype(jnp.int32))
    count_hard = jnp.sum(
        (nll_flat >= jnp.float32(neg_log_thresh)).astype(jnp.int32))

    # OHEM applies iff min_kept <= num_valid and num_valid > 0 (PyTorch elif).
    use_ohem = jnp.logical_and(num_valid >= int(min_kept), num_valid > 0)

    if int(min_kept) > 0:
        kk = min(N, int(min_kept))
        # Exact shortcut: if at least kk pixels already have prob <= thresh,
        # the k-th smallest prob is <= thresh and the threshold is exactly
        # thresh -- skip the expensive top_k entirely.
        need_topk = jnp.logical_and(use_ohem, count_hard < kk)
        thr_ohem = jax.lax.cond(
            need_topk,
            lambda: jax.lax.top_k(nll_flat, kk)[0][kk - 1],   # k-th largest nll
            lambda: jnp.asarray(neg_log_thresh, jnp.float32))
    else:
        thr_ohem = jnp.asarray(neg_log_thresh, jnp.float32)

    # When OHEM is not applied keep everything (invalid pixels have weight 0).
    thr_eff = jnp.where(use_ohem, thr_ohem, jnp.float32(-1e30))
    thr_eff = thr_eff.astype(jnp.float32).reshape(1)

    # ---- final weighted-mean reduction in Pallas -----------------------------
    sums = pl.pallas_call(
        _reduce_kernel,
        out_shape=jax.ShapeDtypeStruct((1, 2), jnp.float32),
        grid_spec=pltpu.PrefetchScalarGridSpec(
            num_scalar_prefetch=0,
            grid=grid,
            in_specs=[
                pl.BlockSpec(memory_space=pltpu.MemorySpace.SMEM),   # threshold
                pl.BlockSpec((None, 1, tile), lambda b, i: (b, 0, i)),
                pl.BlockSpec((None, 1, tile), lambda b, i: (b, 0, i)),
            ],
            out_specs=pl.BlockSpec(memory_space=pltpu.MemorySpace.SMEM),
        ),
        compiler_params=pltpu.CompilerParams(
            dimension_semantics=("arbitrary", "arbitrary"),
            vmem_limit_bytes=48 * 1024 * 1024),
    )(thr_eff, nll_out, w_out)

    # weighted CrossEntropyLoss 'mean' reduction: sum(w_t * nll) / sum(w_t)
    # (NaN when nothing is kept, matching the PyTorch reference behavior)
    return sums[0, 0] / sums[0, 1]


# ---------------------------------------------------------------------------
# MixSoftmaxCrossEntropyOHEMLoss.forward
# ---------------------------------------------------------------------------
def mix_softmax_cross_entropy_ohem_loss(preds, target, *, aux=False,
                                        aux_weight=0.4, ignore_index=-1,
                                        thresh=0.7, min_kept=100000,
                                        class_weight=None):
    if class_weight is None:
        class_weight = CITYSCAPES_WEIGHT

    def _ohem(p):
        return ohem_cross_entropy_2d(p, target, class_weight,
                                     ignore_index=ignore_index,
                                     thresh=thresh, min_kept=min_kept)

    if aux:
        loss = _ohem(preds[0])
        for p in preds[1:]:
            loss = loss + aux_weight * _ohem(p)
    else:
        loss = _ohem(preds[0])
    # TODO(synk): nn.BCELoss is constructed in __init__ but never used in forward.
    return dict(loss=loss)


# ---------------------------------------------------------------------------
# Pure-JAX reference (mirrors the PyTorch semantics) for a sanity check.
# ---------------------------------------------------------------------------
def _reference_loss(pred, target, weight, ignore_index=-1, thresh=0.7,
                    min_kept=100000):
    n, c, h, w = pred.shape
    t = target.reshape(-1)
    valid = t != ignore_index
    t0 = jnp.where(valid, t, 0)
    num_valid = jnp.sum(valid.astype(jnp.int32))

    prob = jax.nn.softmax(pred.astype(jnp.float32), axis=1)
    prob = jnp.transpose(prob, (1, 0, 2, 3)).reshape(c, -1)
    idx = jnp.arange(t.shape[0])
    mask_prob = jnp.where(valid, prob[t0, idx], 1.0)

    sorted_prob = jnp.sort(mask_prob)
    k = min(t.shape[0], int(min_kept)) - 1
    thr = jnp.where(sorted_prob[k] > thresh, sorted_prob[k],
                    jnp.float32(thresh))
    kept = jnp.where((int(min_kept) <= num_valid) & (num_valid > 0),
                     mask_prob <= thr, True)
    final_valid = valid & kept

    logp = jax.nn.log_softmax(pred.astype(jnp.float32), axis=1)
    logp = jnp.transpose(logp, (1, 0, 2, 3)).reshape(c, -1)
    nll = -logp[t0, idx]
    wt = jnp.asarray(weight, jnp.float32)[t0]
    num = jnp.sum(jnp.where(final_valid, wt * nll, 0.0))
    den = jnp.sum(jnp.where(final_valid, wt, 0.0))
    return num / den


if __name__ == "__main__":
    key = jax.random.PRNGKey(0)
    k1, k2 = jax.random.split(key)

    n, c, h, w = 2, 19, 16, 16          # C=19 is fixed by the class weights
    pred = jax.random.normal(k1, (n, c, h, w), jnp.float32)
    target = jax.random.randint(k2, (n, h, w), -1, c, jnp.int32)  # -1 = ignore

    # 1) default min_kept (OHEM inactive branch: min_kept > num_valid)
    out = mix_softmax_cross_entropy_ohem_loss((pred,), target, aux=False)
    loss = jax.block_until_ready(out["loss"])
    ref = _reference_loss(pred, target, CITYSCAPES_WEIGHT)
    assert jnp.isfinite(loss), loss
    assert jnp.allclose(loss, ref, rtol=1e-3, atol=1e-3), (loss, ref)

    # 2) small min_kept (OHEM active branch) + aux head
    pred_aux = 0.5 * pred
    out2 = mix_softmax_cross_entropy_ohem_loss((pred, pred_aux), target,
                                               aux=True, min_kept=64)
    loss2 = jax.block_until_ready(out2["loss"])
    ref2 = (_reference_loss(pred, target, CITYSCAPES_WEIGHT, min_kept=64)
            + 0.4 * _reference_loss(pred_aux, target, CITYSCAPES_WEIGHT,
                                    min_kept=64))
    assert jnp.isfinite(loss2), loss2
    assert jnp.allclose(loss2, ref2, rtol=1e-3, atol=1e-3), (loss2, ref2)

    print("KERNEL_OK")
</pallas_src>

<mosaic_0001>
module attributes {stable_mosaic.version = 11 : i64} {
  func.func @_per_pixel_kernel(%arg0: i32, %arg1: i32, %arg2: memref<1x19x256xf32, #tpu.memory_space<vmem>>, %arg3: memref<1x1x256xi32, #tpu.memory_space<vmem>>, %arg4: memref<2x19xf32, #tpu.memory_space<vmem>>, %arg5: memref<1x1x256xf32, #tpu.memory_space<vmem>>, %arg6: memref<1x1x256xf32, #tpu.memory_space<vmem>>) attributes {dimension_semantics = [#tpu.dimension_semantics<parallel>, #tpu.dimension_semantics<parallel>], iteration_bounds = array<i64: 2, 1>, scalar_prefetch = 0 : i64, scratch_operands = 0 : i64, tpu.core_type = #tpu.core_type<tc>, window_params = [{transform_indices = @transform_0, window_bounds = array<i64: 1, 19, 256>}, {transform_indices = @transform_1, window_bounds = array<i64: 1, 1, 256>}, {pipeline_mode = #tpu.pipeline_mode<synchronous>, transform_indices = @transform_2, window_bounds = array<i64: 2, 19>}, {transform_indices = @transform_3, window_bounds = array<i64: 1, 1, 256>}, {transform_indices = @transform_4, window_bounds = array<i64: 1, 1, 256>}]} {
    %c0 = arith.constant 0 : index
    %c0_0 = arith.constant 0 : index
    %c0_1 = arith.constant 0 : index
    %0 = vector.load %arg2[%c0, %c0_0, %c0_1] : memref<1x19x256xf32, #tpu.memory_space<vmem>>, vector<1x19x256xf32>
    %1 = vector.shape_cast %0 : vector<1x19x256xf32> to vector<19x256xf32>
    %c0_2 = arith.constant 0 : index
    %c0_3 = arith.constant 0 : index
    %c0_4 = arith.constant 0 : index
    %2 = vector.load %arg3[%c0_2, %c0_3, %c0_4] : memref<1x1x256xi32, #tpu.memory_space<vmem>>, vector<1x1x256xi32>
    %3 = vector.shape_cast %2 : vector<1x1x256xi32> to vector<1x256xi32>
    %c-1_i32 = arith.constant -1 : i32
    %4 = vector.broadcast %c-1_i32 : i32 to vector<1x256xi32>
    %5 = arith.cmpi ne, %3, %4 : vector<1x256xi32>
    %c0_i32 = arith.constant 0 : i32
    %6 = vector.broadcast %c0_i32 : i32 to vector<1x256xi32>
    %7 = arith.select %5, %3, %6 : vector<1x256xi1>, vector<1x256xi32>
    %8 = tpu.iota {dimensions = array<i32: 0>} : vector<19x256xi32>
    %9 = vector.broadcast %7 : vector<1x256xi32> to vector<19x256xi32>
    %10 = arith.cmpi eq, %8, %9 : vector<19x256xi32>
    %11 = arith.extui %10 : vector<19x256xi1> to vector<19x256xi32>
    %12 = arith.sitofp %11 : vector<19x256xi32> to vector<19x256xf32>
    %cst = arith.constant dense<0xFF800000> : vector<256xf32>
    %13 = vector.multi_reduction <maximumf>, %1, %cst [0] : vector<19x256xf32> to vector<256xf32>
    %14 = vector.shape_cast %13 : vector<256xf32> to vector<1x256xf32>
    %15 = vector.broadcast %14 : vector<1x256xf32> to vector<19x256xf32>
    %16 = arith.subf %1, %15 : vector<19x256xf32>
    %17 = math.exp %16 : vector<19x256xf32>
    %c0_5 = arith.constant 0 : index
    %c0_6 = arith.constant 0 : index
    %18 = vector.load %arg4[%c0_5, %c0_6] : memref<2x19xf32, #tpu.memory_space<vmem>>, vector<2x19xf32>
    %19 = vector.extract_strided_slice %18 {offsets = [0, 0], sizes = [1, 19], strides = [1, 1]} : vector<2x19xf32> to vector<1x19xf32>
    %cst_7 = arith.constant dense<0.000000e+00> : vector<1x256xf32>
    %20 = tpu.matmul %19, %17, %cst_7 {dimension_numbers = #tpu.dot_dimension_numbers<[1], [0], [0], [1], [0, 0, 1, 1], [], []>} : vector<1x19xf32>, vector<19x256xf32>, vector<1x256xf32> -> vector<1x256xf32>
    %21 = vector.extract_strided_slice %18 {offsets = [1, 0], sizes = [1, 19], strides = [1, 1]} : vector<2x19xf32> to vector<1x19xf32>
    %cst_8 = arith.constant dense<0.000000e+00> : vector<1x256xf32>
    %22 = tpu.matmul %21, %12, %cst_8 {dimension_numbers = #tpu.dot_dimension_numbers<[1], [0], [0], [1], [0, 0, 1, 1], [], []>} : vector<1x19xf32>, vector<19x256xf32>, vector<1x256xf32> -> vector<1x256xf32>
    %23 = arith.mulf %1, %12 : vector<19x256xf32>
    %cst_9 = arith.constant dense<0.000000e+00> : vector<256xf32>
    %24 = vector.multi_reduction <add>, %23, %cst_9 [0] : vector<19x256xf32> to vector<256xf32>
    %25 = vector.shape_cast %24 : vector<256xf32> to vector<1x256xf32>
    %26 = math.log %20 : vector<1x256xf32>
    %27 = arith.addf %26, %14 : vector<1x256xf32>
    %28 = arith.subf %27, %25 : vector<1x256xf32>
    %29 = arith.extui %5 : vector<1x256xi1> to vector<1x256xi32>
    %30 = arith.sitofp %29 : vector<1x256xi32> to vector<1x256xf32>
    %31 = arith.mulf %28, %30 : vector<1x256xf32>
    %c0_10 = arith.constant 0 : index
    %c0_11 = arith.constant 0 : index
    %c0_12 = arith.constant 0 : index
    %32 = vector.load %arg5[%c0_10, %c0_11, %c0_12] : memref<1x1x256xf32, #tpu.memory_space<vmem>>, vector<1x1x256xf32>
    %33 = vector.shape_cast %32 : vector<1x1x256xf32> to vector<1x256xf32>
    %34 = vector.shape_cast %31 : vector<1x256xf32> to vector<1x1x256xf32>
    tpu.vector_store %arg5[%c0_10, %c0_11, %c0_12], %34 {strides = array<i32>} : memref<1x1x256xf32, #tpu.memory_space<vmem>>, vector<1x1x256xf32>,
    %35 = arith.mulf %22, %30 : vector<1x256xf32>
    %c0_13 = arith.constant 0 : index
    %c0_14 = arith.constant 0 : index
    %c0_15 = arith.constant 0 : index
    %36 = vector.load %arg6[%c0_13, %c0_14, %c0_15] : memref<1x1x256xf32, #tpu.memory_space<vmem>>, vector<1x1x256xf32>
    %37 = vector.shape_cast %36 : vector<1x1x256xf32> to vector<1x256xf32>
    %38 = vector.shape_cast %35 : vector<1x256xf32> to vector<1x1x256xf32>
    tpu.vector_store %arg6[%c0_13, %c0_14, %c0_15], %38 {strides = array<i32>} : memref<1x1x256xf32, #tpu.memory_space<vmem>>, vector<1x1x256xf32>,
    return
  }
  func.func @transform_0(%arg0: i32, %arg1: i32) -> (i32, i32, i32) {
    %c0_i32 = arith.constant 0 : i32
    %c0_i32_0 = arith.constant 0 : i32
    return %arg0, %c0_i32, %arg1 : i32, i32, i32
  }
  func.func @transform_1(%arg0: i32, %arg1: i32) -> (i32, i32, i32) {
    %c0_i32 = arith.constant 0 : i32
    %c0_i32_0 = arith.constant 0 : i32
    return %arg0, %c0_i32, %arg1 : i32, i32, i32
  }
  func.func @transform_2(%arg0: i32, %arg1: i32) -> (i32, i32) {
    %c0_i32 = arith.constant 0 : i32
    %c0_i32_0 = arith.constant 0 : i32
    %c0_i32_1 = arith.constant 0 : i32
    return %c0_i32, %c0_i32_0 : i32, i32
  }
  func.func @transform_3(%arg0: i32, %arg1: i32) -> (i32, i32, i32) {
    %c0_i32 = arith.constant 0 : i32
    %c0_i32_0 = arith.constant 0 : i32
    return %arg0, %c0_i32, %arg1 : i32, i32, i32
  }
  func.func @transform_4(%arg0: i32, %arg1: i32) -> (i32, i32, i32) {
    %c0_i32 = arith.constant 0 : i32
    %c0_i32_0 = arith.constant 0 : i32
    return %arg0, %c0_i32, %arg1 : i32, i32, i32
  }
}

</mosaic_0001>

<llo_original>
// kernel: tpu_custom_call.1
$region0: #{tpu_custom_call.1}
  #allocation0 [shape = 'u32[]', space=smem, size = 0x4, offset = 0x4, fixed_abs, tag = 'smem constant byte address 0x4 - core index']
  #allocation1 [shape = 'u32[72,128]{1,0:T(1,128)}', space=vmem, size = 0x9000, scoped, tag = 'internal scratch']
  %s0 = inlined_call_operand.vmem [shape: f32[2,19,256], index: 0, kind: input, shape index: {}]
  %s1 = inlined_call_operand.vmem [shape: s32[2,1,256], index: 1, kind: input, shape index: {}]
  %s2 = inlined_call_operand.vmem [shape: f32[2,19], index: 2, kind: input, shape index: {}]
  %s3 = inlined_call_operand.hbm [shape: f32[2,1,256], index: 3, kind: output, shape index: {0}]
  %s4 = inlined_call_operand.hbm [shape: f32[2,1,256], index: 4, kind: output, shape index: {1}]
  %5 = xla_tuple %s3, %s4
  %s6 = sld [smem:[#allocation0]]
  $region53: #{tpu_custom_call.1} parent=0
    _
  %s8 = ssub.s32 1, %s6
  %s9 = scalar_select 0, %s8, %s6
  $region1: #{tpu_custom_call.1} parent=0
    #allocation2 [shape = 'u8[2048]{0}', space=vmem, size = 0x800, scoped, tag = 'output window, operand 0']
    #allocation3 [shape = 's32[2]{0}', space=sflag, size = 0x8, scoped, tag = 'scoped memory for tpu_custom_call.1']
    #allocation4 [shape = 'u8[2048]{0}', space=vmem, size = 0x800, scoped, tag = 'output window, operand 1']
    #allocation5 [shape = 's32[2]{0}', space=sflag, size = 0x8, scoped, tag = 'scoped memory for tpu_custom_call.1']
    %10 = vsyncpa [#allocation3], 0
    %s11 = scalar_lea.sflag [#allocation3], 1
    %12 = vsyncpa %s11, 0
    %13 = vsyncpa [#allocation5], 0
    %s14 = scalar_lea.sflag [#allocation5], 1
    %15 = vsyncpa %s14, 0
    loop: start=0, step=1, limit=4
    $region2: #{tpu_custom_call.1} parent=1 // loop_pre_header
      _
    $region3: #{tpu_custom_call.1} parent=1 // loop_header
      %s17 = sphi 0, %s21
      %p18 = scmp.ge.s32.totalorder %s17, 4
      %s24 = sphi 0, %s36
      %s25 = sphi 0, %s32
      %s26 = sphi 0, %s24
      %s27 = sphi 0, %s25
      %s28 = sphi 0, %s26
      %s29 = sphi 0, %s27
      %s41 = sphi 0, %s43
      %s44 = sphi 0, %s41
      %s45 = sphi 0, %s44
      %s61 = sphi 0, %s45
      %s69 = sphi 0, %s71
      %s72 = sphi 0, %s69
      %s73 = sphi 0, %s72
      %s89 = sphi 0, %s73
      %s93 = sphi 0, %s93
      %s95 = sphi 0, %s93
      %s96 = sphi 0, %s95
      %s110 = sphi 0, %s96
      %s118 = sphi 0, %s120
      %s121 = sphi 0, %s118
      %s122 = sphi 0, %s121
      %s138 = sphi 0, %s122
      %s146 = sphi 0, %s148
      %s149 = sphi 0, %s146
      %s150 = sphi 0, %s149
      %s166 = sphi 0, %s150
    $region4: #{tpu_custom_call.1} parent=1 // loop_header_branch
      %20 = sbr.rel (%p18) target = $region8
    $region5: #{tpu_custom_call.1} parent=1 // loop_body
      %s22 = ssub.s32 %s17, 1
      %s23 = ssub.s32 %s17, 2
      %s30 = sadd.s32 1, %s25
      %p31 = scmp.ge.s32.totalorder %s30, 1
      %s32 = scalar_select %p31, 0, %s30
      %s33 = sadd.s32 1, %s24
      %s34 = scalar_select %p31, %s33, %s24
      %p35 = scmp.ge.s32.totalorder %s34, 2
      %s36 = scalar_select %p35, 0, %s34
      %s37 = ssub.s32 %s24, %s36
      %s38 = ssub.s32 %s25, %s32
      %s39 = sor.u32 %s37, %s38
      %p40 = scmp.eq.s32.totalorder %s39, 0
      %s42 = sadd.s32 %s41, 1
      %s43 = scalar_select %p40, %s41, %s42
      %p46 = pneg %p40
      %p47 = scmp.eq.s32.totalorder %s17, 1
      %p48 = por %p46, %p47
      %p49 = scmp.ne.s32.totalorder %s41, %s44
      %p50 = scmp.eq.s32.totalorder %s17, 0
      %p51 = por %p49, %p50
      %p52 = scmp.ne.s32.totalorder %s41, %s44
      %p53 = scmp.eq.s32.totalorder %s22, 1
      %p54 = por %p52, %p53
      %p55 = scmp.ne.s32.totalorder %s44, %s45
      %p56 = scmp.eq.s32.totalorder %s22, 0
      %p57 = por %p55, %p56
      %p58 = scmp.ne.s32.totalorder %s44, %s45
      %p59 = scmp.eq.s32.totalorder %s23, 1
      %p60 = por %p58, %p59
      %p62 = scmp.ne.s32.totalorder %s45, %s61
      %p63 = scmp.eq.s32.totalorder %s23, 0
      %p64 = por %p62, %p63
      %s65 = ssub.s32 %s24, %s36
      %s66 = ssub.s32 %s25, %s32
      %s67 = sor.u32 %s65, %s66
      %p68 = scmp.eq.s32.totalorder %s67, 0
      %s70 = sadd.s32 %s69, 1
      %s71 = scalar_select %p68, %s69, %s70
      %p74 = pneg %p68
      %p75 = scmp.eq.s32.totalorder %s17, 1
      %p76 = por %p74, %p75
      %p77 = scmp.ne.s32.totalorder %s69, %s72
      %p78 = scmp.eq.s32.totalorder %s17, 0
      %p79 = por %p77, %p78
      %p80 = scmp.ne.s32.totalorder %s69, %s72
      %p81 = scmp.eq.s32.totalorder %s22, 1
      %p82 = por %p80, %p81
      %p83 = scmp.ne.s32.totalorder %s72, %s73
      %p84 = scmp.eq.s32.totalorder %s22, 0
      %p85 = por %p83, %p84
      %p86 = scmp.ne.s32.totalorder %s72, %s73
      %p87 = scmp.eq.s32.totalorder %s23, 1
      %p88 = por %p86, %p87
      %p90 = scmp.ne.s32.totalorder %s73, %s89
      %p91 = scmp.eq.s32.totalorder %s23, 0
      %p92 = por %p90, %p91
      %s94 = sadd.s32 %s93, 1
      %p97 = scmp.eq.s32.totalorder %s17, 1
      %p98 = scmp.ne.s32.totalorder %s93, %s95
      %p99 = scmp.eq.s32.totalorder %s17, 0
      %p100 = por %p98, %p99
      %p101 = scmp.ne.s32.totalorder %s93, %s95
      %p102 = scmp.eq.s32.totalorder %s22, 1
      %p103 = por %p101, %p102
      %p104 = scmp.ne.s32.totalorder %s95, %s96
      %p105 = scmp.eq.s32.totalorder %s22, 0
      %p106 = por %p104, %p105
      %p107 = scmp.ne.s32.totalorder %s95, %s96
      %p108 = scmp.eq.s32.totalorder %s23, 1
      %p109 = por %p107, %p108
      %p111 = scmp.ne.s32.totalorder %s96, %s110
      %p112 = scmp.eq.s32.totalorder %s23, 0
      %p113 = por %p111, %p112
      %s114 = ssub.s32 %s24, %s36
      %s115 = ssub.s32 %s25, %s32
      %s116 = sor.u32 %s114, %s115
      %p117 = scmp.eq.s32.totalorder %s116, 0
      %s119 = sadd.s32 %s118, 1
      %s120 = scalar_select %p117, %s118, %s119
      %p123 = pneg %p117
      %p124 = scmp.eq.s32.totalorder %s17, 1
      %p125 = por %p123, %p124
      %p126 = scmp.ne.s32.totalorder %s118, %s121
      %p127 = scmp.eq.s32.totalorder %s17, 0
      %p128 = por %p126, %p127
      %p129 = scmp.ne.s32.totalorder %s118, %s121
      %p130 = scmp.eq.s32.totalorder %s22, 1
      %p131 = por %p129, %p130
      %p132 = scmp.ne.s32.totalorder %s121, %s122
      %p133 = scmp.eq.s32.totalorder %s22, 0
      %p134 = por %p132, %p133
      %p135 = scmp.ne.s32.totalorder %s121, %s122
      %p136 = scmp.eq.s32.totalorder %s23, 1
      %p137 = por %p135, %p136
      %p139 = scmp.ne.s32.totalorder %s122, %s138
      %p140 = scmp.eq.s32.totalorder %s23, 0
      %p141 = por %p139, %p140
      %s142 = ssub.s32 %s24, %s36
      %s143 = ssub.s32 %s25, %s32
      %s144 = sor.u32 %s142, %s143
      %p145 = scmp.eq.s32.totalorder %s144, 0
      %s147 = sadd.s32 %s146, 1
      %s148 = scalar_select %p145, %s146, %s147
      %p151 = pneg %p145
      %p152 = scmp.eq.s32.totalorder %s17, 1
      %p153 = por %p151, %p152
      %p154 = scmp.ne.s32.totalorder %s146, %s149
      %p155 = scmp.eq.s32.totalorder %s17, 0
      %p156 = por %p154, %p155
      %p157 = scmp.ne.s32.totalorder %s146, %s149
      %p158 = scmp.eq.s32.totalorder %s22, 1
      %p159 = por %p157, %p158
      %p160 = scmp.ne.s32.totalorder %s149, %s150
      %p161 = scmp.eq.s32.totalorder %s22, 0
      %p162 = por %p160, %p161
      %p163 = scmp.ne.s32.totalorder %s149, %s150
      %p164 = scmp.eq.s32.totalorder %s23, 1
      %p165 = por %p163, %p164
      %p167 = scmp.ne.s32.totalorder %s150, %s166
      %p168 = scmp.eq.s32.totalorder %s23, 0
      %p169 = por %p167, %p168
      %p170 = scmp.le.s32.totalorder 1, %s17
      %p171 = scmp.lt.s32.totalorder %s17, 3
      %p172 = pnand %p170, %p171
      %p173 = pneg %p172
      // Predicated region
      $region9: #{tpu_custom_call.1} parent=5 // pred_check
        _
      $region10: #{tpu_custom_call.1} parent=5 // pred_check_branch
        %175 = sbr.rel (%p172) target = $region12
      $region11: #{tpu_custom_call.1} parent=5 // pred_region
        %s176 = ssub.s32 %s17, 1
        // Predicated region
        $region13: #{tpu_custom_call.1} parent=11 // pred_check
          %p177 = pneg %p106
        $region14: #{tpu_custom_call.1} parent=11 // pred_check_branch
          %179 = sbr.rel (%p177) target = $region16
        $region15: #{tpu_custom_call.1} parent=11 // pred_region
          _
        $region16: #{tpu_custom_call.1} parent=11 // pred_fallthru
          _
      $region12: #{tpu_custom_call.1} parent=5 // pred_fallthru
        _
      %p180 = scmp.lt.s32.totalorder %s17, 2
      // Predicated region
      $region17: #{tpu_custom_call.1} parent=5 // pred_check
        %p181 = pneg %p180
      $region18: #{tpu_custom_call.1} parent=5 // pred_check_branch
        %183 = sbr.rel (%p181) target = $region20
      $region19: #{tpu_custom_call.1} parent=5 // pred_region
        // Predicated region
        $region21: #{tpu_custom_call.1} parent=19 // pred_check
          %p184 = pneg %p51
        $region22: #{tpu_custom_call.1} parent=19 // pred_check_branch
          %186 = sbr.rel (%p184) target = $region24
        $region23: #{tpu_custom_call.1} parent=19 // pred_region
          %s187 = smul.u32 2, %s25
          %p188 = scmp.lt.s32.totalorder %s24, 1
          %s189 = scalar_select %p188, %s24, 1
          %p190 = scmp.lt.s32.totalorder %s187, 1
          %s191 = scalar_select %p190, %s187, 1
          %s192 = smul.addr %s189, 6
          %s193 = sadd.s32 %s191, %s192
          %s194 = smul.addr %s193, 8
          %s195 = scalar_lea.vmem %s0, %s194
          %s196 = smul.u32 2, %s25
        $region24: #{tpu_custom_call.1} parent=19 // pred_fallthru
          _
        // Predicated region
        $region25: #{tpu_custom_call.1} parent=19 // pred_check
          %p197 = pneg %p79
        $region26: #{tpu_custom_call.1} parent=19 // pred_check_branch
          %199 = sbr.rel (%p197) target = $region28
        $region27: #{tpu_custom_call.1} parent=19 // pred_region
          %s200 = smul.u32 2, %s25
          %p201 = scmp.lt.s32.totalorder %s24, 1
          %s202 = scalar_select %p201, %s24, 1
          %p203 = scmp.lt.s32.totalorder %s200, 1
          %s204 = scalar_select %p203, %s200, 1
          %s205 = smul.addr %s202, 2
          %s206 = sadd.s32 %s204, %s205
          %s207 = scalar_lea.vmem %s1, %s206
          %s208 = smul.u32 2, %s25
        $region28: #{tpu_custom_call.1} parent=19 // pred_fallthru
          _
      $region20: #{tpu_custom_call.1} parent=5 // pred_fallthru
        _
      %p209 = scmp.le.s32.totalorder 1, %s17
      %p210 = scmp.lt.s32.totalorder %s17, 3
      %p211 = pnand %p209, %p210
      %p212 = pneg %p211
      // Predicated region
      $region29: #{tpu_custom_call.1} parent=5 // pred_check
        _
      $region30: #{tpu_custom_call.1} parent=5 // pred_check_branch
        %214 = sbr.rel (%p211) target = $region32
      $region31: #{tpu_custom_call.1} parent=5 // pred_region
        %s215 = ssub.s32 %s17, 1
        %s216 = smul.u32 2, %s27
        %p217 = scmp.lt.s32.totalorder %s26, 1
        %s218 = scalar_select %p217, %s26, 1
        %p219 = scmp.lt.s32.totalorder %s216, 1
        %s220 = scalar_select %p219, %s216, 1
        %s221 = smul.addr %s218, 6
        %s222 = sadd.s32 %s220, %s221
        %s223 = smul.addr %s222, 8
        %s224 = scalar_lea.vmem %s0, %s223
        %p225 = pneg %p57
        %p226 = pneg %p54
        %s227 = smul.u32 2, %s27
        %p228 = scmp.lt.s32.totalorder %s26, 1
        %s229 = scalar_select %p228, %s26, 1
        %p230 = scmp.lt.s32.totalorder %s227, 1
        %s231 = scalar_select %p230, %s227, 1
        %s232 = smul.addr %s229, 2
        %s233 = sadd.s32 %s231, %s232
        %s234 = scalar_lea.vmem %s1, %s233
        %p235 = pneg %p85
        %p236 = pneg %p82
        %p237 = pneg %p106
        %p238 = pneg %p103
        %p239 = pneg %p134
        %p240 = pneg %p131
        %s241 = sand.u32 %s121, 1
        %s242 = scalar_lea.sflag [#allocation3], %s241
        %s243 = sand.u32 %s121, 1
        %s244 = smul.addr %s243, 2
        %s245 = scalar_lea.vmem [#allocation2], %s244
        %p246 = pneg %p162
        %p247 = pneg %p159
        %s248 = sand.u32 %s149, 1
        %s249 = scalar_lea.sflag [#allocation5], %s248
        %s250 = sand.u32 %s149, 1
        %s251 = smul.addr %s250, 2
        %s252 = scalar_lea.vmem [#allocation4], %s251
        %s253 = smul.u32 2, %s27
        %p254 = scmp.lt.s32.totalorder %s26, 1
        %s255 = scalar_select %p254, %s26, 1
        %p256 = scmp.lt.s32.totalorder %s253, 1
        %s257 = scalar_select %p256, %s253, 1
        %s258 = smul.addr %s255, 6
        %s259 = sadd.s32 %s257, %s258
        %s260 = smul.addr %s259, 8
        %s261 = scalar_lea.vmem %s0, %s260
        %s262 = smul.u32 2, %s27
        %s263 = smul.u32 2, %s27
        %p264 = scmp.lt.s32.totalorder %s26, 1
        %s265 = scalar_select %p264, %s26, 1
        %p266 = scmp.lt.s32.totalorder %s263, 1
        %s267 = scalar_select %p266, %s263, 1
        %s268 = smul.addr %s265, 2
        %s269 = sadd.s32 %s267, %s268
        %s270 = scalar_lea.vmem %s1, %s269
        %s271 = smul.u32 2, %s27
        %s272 = smul.u32 2, %s27
        %s273 = smul.u32 2, %s27
        %v274 = vld [vmem:[%s261] sm:$0xff]
        %v275 = vld [vmem:[%s261 + $0x8] sm:$0xff]
        %v276 = vld [vmem:[%s261 + $0x10] sm:$0xff]
        %v277 = vld [vmem:[%s261 + $0x18] sm:$0xff]
        %v278 = vld [vmem:[%s261 + $0x20] sm:$0x7]
        %v279 = vld [vmem:[%s261 + $0x28] sm:$0x7]
        %v280 = vld [vmem:[%s270] sm:$0x3]
        %vm281 = vcmp.ne.s32.totalorder %v280, 4294967295
        %v282 = vsel %vm281, %v280, 0
        %v283 = vlaneseq
        %v284 = vshrl.u32 %v283, 7
        %v285 = vadd.s32 %v284, 8
        %v286 = vadd.s32 %v284, 16
        %v287 = vperm.slane %v282, 0
        %v288 = vperm.slane %v282, 1
        %vm289 = vcmp.eq.s32.totalorder %v284, %v287
        %vm290 = vcmp.eq.s32.totalorder %v284, %v288
        %vm291 = vcmp.eq.s32.totalorder %v285, %v287
        %vm292 = vcmp.eq.s32.totalorder %v285, %v288
        %vm293 = vcmp.eq.s32.totalorder %v286, %v287
        %vm294 = vcmp.eq.s32.totalorder %v286, %v288
        %v295 = vsel %vm289, 1, 0
        %v296 = vsel %vm290, 1, 0
        %v297 = vsel %vm291, 1, 0
        %v298 = vsel %vm292, 1, 0
        %v299 = vsel %vm293, 1, 0
        %v300 = vsel %vm294, 1, 0
        %v301 = vcvt.s32.f32 %v295
        %v302 = vcvt.s32.f32 %v296
        %v303 = vcvt.s32.f32 %v297
        %v304 = vcvt.s32.f32 %v298
        %v305 = vcvt.s32.f32 %v299
        %v306 = vcvt.s32.f32 %v300
        %vm307 = vcmask 1042432
        %v308 = vsel %vm307, %v278, -inf
        %v309 = vmax.f32 %v274, %v308
        %v310 = vmax.f32 %v309, %v276
        %v311 = vrot.slane %v310, 4
        %v312 = vmax.f32 %v310, %v311
        %v313 = vrot.slane %v312, 2
        %v314 = vmax.f32 %v312, %v313
        %v315 = vrot.slane %v314, 1
        %v316 = vmax.f32 %v314, %v315
        %v317 = vsel %vm307, %v279, -inf
        %v318 = vmax.f32 %v275, %v317
        %v319 = vmax.f32 %v318, %v277
        %v320 = vrot.slane %v319, 4
        %v321 = vmax.f32 %v319, %v320
        %v322 = vrot.slane %v321, 2
        %v323 = vmax.f32 %v321, %v322
        %v324 = vrot.slane %v323, 1
        %v325 = vmax.f32 %v323, %v324
        %v326 = vsub.f32 %v274, %v316
        %v327 = vsub.f32 %v275, %v325
        %v328 = vsub.f32 %v276, %v316
        %v329 = vsub.f32 %v277, %v325
        %v330 = vsub.f32 %v278, %v316
        %v331 = vsub.f32 %v279, %v325
        %v332 = vmul.f32 %v326, 1.442695
        %v333 = vpow.pop %v332
        %v334 = vmul.f32 %v327, 1.442695
        %v335 = vpow.pop %v334
        %v336 = vmul.f32 %v328, 1.442695
        %v337 = vpow.pop %v336
        %v338 = vmul.f32 %v329, 1.442695
        %v339 = vpow.pop %v338
        %v340 = vmul.f32 %v330, 1.442695
        %v341 = vpow.pop %v340
        %v342 = vmul.f32 %v331, 1.442695
        %v343 = vpow.pop %v342
        %v344 = vld [vmem:[%s2] sm:$0x3]
        %vm345 = vcmask 154624
        %v347 = vsel %vm345, %v344, 0
        %v350 = vsel %vm307, %v341, 0
        %v353 = vsel %vm307, %v343, 0
        %355 = vmatpush.msra.mxu0 0.0
        %356 = vmatpush.msra.mxu0 0.0
        %357 = vmatpush.msra.mxu0 0.0
        %358 = vmatpush.msra.mxu0 0.0
        %359 = vmatpush.msra.mxu0 0.0
        %360 = vmatpush.msra.mxu0 0.0
        %361 = vmatpush.msra.mxu0 0.0
        %362 = vmatpush.msra.mxu0 0.0
        %363 = vmatpush.msra.mxu0 0.0
        %364 = vmatpush.msra.mxu0 0.0
        %365 = vmatpush.msra.mxu0 0.0
        %366 = vmatpush.msra.mxu0 0.0
        %367 = vmatpush.msra.mxu0 0.0
        %368 = vmatpush.msra.mxu0 %v350
        %369 = vmatpush.msra.mxu0 %v337
        %370 = vmatpush.msra.mxu0 %v333
        %371 = vmatmul.f32.gmra.mxu0 %v347
        %v372 = vpop.f32.mrf.mxu0
        %v373 = vadd.f32 0.0, %v372
        %374 = vdwg.mxu0
        %375 = vmatpush.msra.mxu0 0.0
        %376 = vmatpush.msra.mxu0 0.0
        %377 = vmatpush.msra.mxu0 0.0
        %378 = vmatpush.msra.mxu0 0.0
        %379 = vmatpush.msra.mxu0 0.0
        %380 = vmatpush.msra.mxu0 0.0
        %381 = vmatpush.msra.mxu0 0.0
        %382 = vmatpush.msra.mxu0 0.0
        %383 = vmatpush.msra.mxu0 0.0
        %384 = vmatpush.msra.mxu0 0.0
        %385 = vmatpush.msra.mxu0 0.0
        %386 = vmatpush.msra.mxu0 0.0
        %387 = vmatpush.msra.mxu0 0.0
        %388 = vmatpush.msra.mxu0 %v353
        %389 = vmatpush.msra.mxu0 %v339
        %390 = vmatpush.msra.mxu0 %v335
        %391 = vmatmul.f32.gmra.mxu0 %v347
        %v392 = vpop.f32.mrf.mxu0
        %v393 = vadd.f32 0.0, %v392
        %394 = vdwg.mxu0
        %v395 = vrot.slane %v344, 1
        %v396 = vsel %vm345, %v395, 0
        %v399 = vsel %vm307, %v305, 0
        %v402 = vsel %vm307, %v306, 0
        %404 = vmatpush.msra.mxu0 0.0
        %405 = vmatpush.msra.mxu0 0.0
        %406 = vmatpush.msra.mxu0 0.0
        %407 = vmatpush.msra.mxu0 0.0
        %408 = vmatpush.msra.mxu0 0.0
        %409 = vmatpush.msra.mxu0 0.0
        %410 = vmatpush.msra.mxu0 0.0
        %411 = vmatpush.msra.mxu0 0.0
        %412 = vmatpush.msra.mxu0 0.0
        %413 = vmatpush.msra.mxu0 0.0
        %414 = vmatpush.msra.mxu0 0.0
        %415 = vmatpush.msra.mxu0 0.0
        %416 = vmatpush.msra.mxu0 0.0
        %417 = vmatpush.msra.mxu0 %v399
        %418 = vmatpush.msra.mxu0 %v303
        %419 = vmatpush.msra.mxu0 %v301
        %420 = vmatmul.f32.gmra.mxu0 %v396
        %v421 = vpop.f32.mrf.mxu0
        %v422 = vadd.f32 0.0, %v421
        %423 = vdwg.mxu0
        %424 = vmatpush.msra.mxu0 0.0
        %425 = vmatpush.msra.mxu0 0.0
        %426 = vmatpush.msra.mxu0 0.0
        %427 = vmatpush.msra.mxu0 0.0
        %428 = vmatpush.msra.mxu0 0.0
        %429 = vmatpush.msra.mxu0 0.0
        %430 = vmatpush.msra.mxu0 0.0
        %431 = vmatpush.msra.mxu0 0.0
        %432 = vmatpush.msra.mxu0 0.0
        %433 = vmatpush.msra.mxu0 0.0
        %434 = vmatpush.msra.mxu0 0.0
        %435 = vmatpush.msra.mxu0 0.0
        %436 = vmatpush.msra.mxu0 0.0
        %437 = vmatpush.msra.mxu0 %v402
        %438 = vmatpush.msra.mxu0 %v304
        %439 = vmatpush.msra.mxu0 %v302
        %440 = vmatmul.f32.gmra.mxu0 %v396
        %v441 = vpop.f32.mrf.mxu0
        %v442 = vadd.f32 0.0, %v441
        %443 = vdwg.mxu0
        %v444 = vmul.f32 %v274, %v301
        %v445 = vmul.f32 %v275, %v302
        %v446 = vmul.f32 %v276, %v303
        %v447 = vmul.f32 %v277, %v304
        %v448 = vmul.f32 %v278, %v305
        %v449 = vmul.f32 %v279, %v306
        %v450 = vadd.f32 %v444, %v446
        %v451 = vsel %vm307, %v448, 0.0
        %v452 = vadd.f32 %v450, %v451
        %v453 = vrot.slane %v452, 4
        %v454 = vadd.f32 %v452, %v453
        %v455 = vrot.slane %v454, 2
        %v456 = vadd.f32 %v454, %v455
        %v457 = vrot.slane %v456, 1
        %v458 = vadd.f32 %v456, %v457
        %v459 = vadd.f32 %v445, %v447
        %v460 = vsel %vm307, %v449, 0.0
        %v461 = vadd.f32 %v459, %v460
        %v462 = vrot.slane %v461, 4
        %v463 = vadd.f32 %v461, %v462
        %v464 = vrot.slane %v463, 2
        %v465 = vadd.f32 %v463, %v464
        %v466 = vrot.slane %v465, 1
        %v467 = vadd.f32 %v465, %v466
        %v468 = vlog2.pop %v373
        %v469 = vmul.f32 %v468, 0.6931472
        %v470 = vlog2.pop %v393
        %v471 = vmul.f32 %v470, 0.6931472
        %v472 = vadd.f32 %v469, %v316
        %v473 = vadd.f32 %v471, %v325
        %v474 = vsub.f32 %v472, %v458
        %v475 = vsub.f32 %v473, %v467
        %v476 = vsel %vm281, 1, 0
        %v477 = vcvt.s32.f32 %v476
        %v479 = vperm.slane %v477, 0
        %v480 = vperm.slane %v477, 1
        %v483 = vmul.f32 %v474, %v479
        %v484 = vmul.f32 %v475, %v480
        %v487 = vrot.slane %v484, 7
        %vm488 = vcmask 1040384
        %v489 = vsel %vm488, %v483, %v487
        %v491 = vlaneseq
        %vm492 = vcmp.ge.s32.totalorder %v491, 0
        %vm493 = vcmp.lt.s32.totalorder %v491, 256
        %vm494 = vmand %vm492, %vm493
        %495 = vst.msk [vmem:[%s245] sm:$0x3] %vm494, %v489
        %v496 = vmul.f32 %v422, %v479
        %v497 = vmul.f32 %v442, %v480
        %v500 = vrot.slane %v497, 7
        %v501 = vsel %vm488, %v496, %v500
        %503 = vst.msk [vmem:[%s252] sm:$0x3] %vm494, %v501
        %s504 = sand.u32 %s121, 1
        %s505 = scalar_lea.sflag [#allocation3], %s504
        %s506 = sand.u32 %s121, 1
        %s507 = smul.addr %s506, 2
        %s508 = scalar_lea.vmem [#allocation2], %s507
        %s509 = sand.u32 %s149, 1
        %s510 = scalar_lea.sflag [#allocation5], %s509
        %s511 = sand.u32 %s149, 1
        %s512 = smul.addr %s511, 2
        %s513 = scalar_lea.vmem [#allocation4], %s512
        // Predicated region
        $region33: #{tpu_custom_call.1} parent=31 // pred_check
          %p514 = pneg %p131
        $region34: #{tpu_custom_call.1} parent=31 // pred_check_branch
          %516 = sbr.rel (%p514) target = $region36
        $region35: #{tpu_custom_call.1} parent=31 // pred_region
          %s517 = smul.u32 2, %s27
          %519 = vsyncadd %s505, 0
          %s520 = smul.addr %s26, 2
          %s521 = sadd.s32 %s517, %s520
          %s522 = scalar_lea.hbm %s3, %s521
          %s524 = sshll.u32 %s508, 4
          %s525 = int_to_ptr.vmem [resolvable:$true] %s524
          %s526 = sshll.u32 %s522, 4
          %s527 = int_to_ptr.hbm [resolvable:$true] %s526
          %529 = dma.vmem_to_hbm [thread:$0]  %s525, 32, %s527, %s505
        $region36: #{tpu_custom_call.1} parent=31 // pred_fallthru
          _
        // Predicated region
        $region37: #{tpu_custom_call.1} parent=31 // pred_check
          %p530 = pneg %p159
        $region38: #{tpu_custom_call.1} parent=31 // pred_check_branch
          %532 = sbr.rel (%p530) target = $region40
        $region39: #{tpu_custom_call.1} parent=31 // pred_region
          %s533 = smul.u32 2, %s27
          %535 = vsyncadd %s510, 0
          %s536 = smul.addr %s26, 2
          %s537 = sadd.s32 %s533, %s536
          %s538 = scalar_lea.hbm %s4, %s537
          %s540 = sshll.u32 %s513, 4
          %s541 = int_to_ptr.vmem [resolvable:$true] %s540
          %s542 = sshll.u32 %s538, 4
          %s543 = int_to_ptr.hbm [resolvable:$true] %s542
          %545 = dma.vmem_to_hbm [thread:$0]  %s541, 32, %s543, %s510
        $region40: #{tpu_custom_call.1} parent=31 // pred_fallthru
          _
      $region32: #{tpu_custom_call.1} parent=5 // pred_fallthru
        _
      %p546 = scmp.le.s32.totalorder 2, %s17
      // Predicated region
      $region41: #{tpu_custom_call.1} parent=5 // pred_check
        %p547 = pneg %p546
      $region42: #{tpu_custom_call.1} parent=5 // pred_check_branch
        %549 = sbr.rel (%p547) target = $region44
      $region43: #{tpu_custom_call.1} parent=5 // pred_region
        %s550 = ssub.s32 %s17, 2
        // Predicated region
        $region45: #{tpu_custom_call.1} parent=43 // pred_check
          %p551 = pneg %p137
        $region46: #{tpu_custom_call.1} parent=43 // pred_check_branch
          %553 = sbr.rel (%p551) target = $region48
        $region47: #{tpu_custom_call.1} parent=43 // pred_region
          %s554 = sand.u32 %s122, 1
          %s555 = scalar_lea.sflag [#allocation3], %s554
          %s556 = sand.u32 %s122, 1
          %s557 = smul.addr %s556, 2
          %s558 = scalar_lea.vmem [#allocation2], %s557
          %560 = dma.done %s555, 32
        $region48: #{tpu_custom_call.1} parent=43 // pred_fallthru
          _
        // Predicated region
        $region49: #{tpu_custom_call.1} parent=43 // pred_check
          %p561 = pneg %p165
        $region50: #{tpu_custom_call.1} parent=43 // pred_check_branch
          %563 = sbr.rel (%p561) target = $region52
        $region51: #{tpu_custom_call.1} parent=43 // pred_region
          %s564 = sand.u32 %s150, 1
          %s565 = scalar_lea.sflag [#allocation5], %s564
          %s566 = sand.u32 %s150, 1
          %s567 = smul.addr %s566, 2
          %s568 = scalar_lea.vmem [#allocation4], %s567
          %570 = dma.done %s565, 32
        $region52: #{tpu_custom_call.1} parent=43 // pred_fallthru
          _
      $region44: #{tpu_custom_call.1} parent=5 // pred_fallthru
        _
    $region6: #{tpu_custom_call.1} parent=1 // loop_footer
      %s21 = sadd.s32 1, %s17
    $region7: #{tpu_custom_call.1} parent=1 // loop_footer_branch
      %16 = sbr.rel target = $region3
    $region8: #{tpu_custom_call.1} parent=1 // loop_exit
      _
    %571 = vsyncpa [#allocation3], 1
    %s572 = scalar_lea.sflag [#allocation3], 1
    %573 = vsyncpa %s572, 1
    %574 = vsyncpa [#allocation5], 1
    %s575 = scalar_lea.sflag [#allocation5], 1
    %576 = vsyncpa %s575, 1

</llo_original>
